<compile_context>
chip_gen: v7x
topology: tpu7x:2x2x1
jax: 0.10.0
libtpu: 0.0.40
codegen_flags: <defaults>
</compile_context>

<pallas_src>
import functools

import jax
import jax.numpy as jnp
from jax.experimental import pallas as pl
from jax.experimental.pallas import tpu as pltpu

LN_EPS = 1e-5


def _round_up(v, m):
    return ((v + m - 1) // m) * m


def ffn_kernel(x_ref, w1_ref, b1_ref, w2_ref, b2_ref, gamma_ref, beta_ref,
               o_ref, acc_ref, *, matmul_dtype):
    # Grid: (token_tiles, hidden_tiles).  Hidden axis is the fc2 reduction axis.
    k = pl.program_id(1)

    @pl.when(k == 0)
    def _():
        acc_ref[...] = jnp.zeros_like(acc_ref)

    # fc1 hidden-slab: full D contraction in one shot, so bias1 + ReLU applied
    # per slab is exact.
    xm = x_ref[...].astype(matmul_dtype)
    h = jnp.dot(xm, w1_ref[...], preferred_element_type=jnp.float32)
    h = jnp.maximum(h + b1_ref[...].astype(jnp.float32), 0.0)

    # fc2 K-slab, accumulate in f32 VMEM scratch.
    acc_ref[...] += jnp.dot(h.astype(matmul_dtype), w2_ref[...],
                            preferred_element_type=jnp.float32)

    @pl.when(k == pl.num_programs(1) - 1)
    def _():
        # dropout is identity in eval mode
        # TODO(synk): training-mode dropout (stateful PRNG) not implemented
        y = acc_ref[...] + b2_ref[...].astype(jnp.float32) \
            + x_ref[...].astype(jnp.float32)                      # residual
        # LayerNorm over last dim (biased variance, eps inside rsqrt — PyTorch match)
        mean = jnp.mean(y, axis=-1, keepdims=True)
        centered = y - mean
        var = jnp.mean(centered * centered, axis=-1, keepdims=True)
        ynorm = centered * jax.lax.rsqrt(var + LN_EPS)
        o_ref[...] = (ynorm * gamma_ref[...].astype(jnp.float32)
                      + beta_ref[...].astype(jnp.float32)).astype(o_ref.dtype)


@functools.partial(
    jax.jit, static_argnames=("block_tokens", "block_hidden", "matmul_dtype"))
def position_wise_feed_forward(x, w1, b1, w2, b2, gamma, beta, *,
                               block_tokens=256, block_hidden=512,
                               matmul_dtype=jnp.bfloat16):
    """x: (B, S, D). Weights stored pre-transposed: w1 (D, H), w2 (H, D)."""
    B, S, D = x.shape
    H = w1.shape[1]
    T = B * S

    # --- token tiling: clamp tile to the (rounded) token count, pad, slice back ---
    tm = min(block_tokens, _round_up(T, 16))
    Tp = _round_up(T, tm)
    x2d = x.reshape(T, D)
    if Tp != T:
        x2d = jnp.pad(x2d, ((0, Tp - T), (0, 0)))

    # --- hidden (K) tiling: stream weight slabs instead of keeping them resident ---
    tH = min(block_hidden, H)
    Hp = _round_up(H, tH)
    w1m = w1.astype(matmul_dtype)
    w2m = w2.astype(matmul_dtype)
    b1r = b1.reshape(1, H)
    if Hp != H:
        # zero-padding the hidden dim is exact: relu(0 + 0) rows hit zero w2 rows
        w1m = jnp.pad(w1m, ((0, 0), (0, Hp - H)))
        w2m = jnp.pad(w2m, ((0, Hp - H), (0, 0)))
        b1r = jnp.pad(b1r, ((0, 0), (0, Hp - H)))

    b2r = b2.reshape(1, D)
    gr = gamma.reshape(1, D)
    br = beta.reshape(1, D)

    grid = (Tp // tm, Hp // tH)

    # Explicit VMEM budget (double-buffered inputs/outputs + f32 accumulator),
    # clamped to 64 MiB so the same config is safe on v7x's smaller VMEM.
    ix = jnp.dtype(x.dtype).itemsize
    iw = jnp.dtype(matmul_dtype).itemsize
    est = 2 * (tm * D * ix            # x tile
               + D * tH * iw          # w1 slab
               + tH * 4               # b1 slab
               + tH * D * iw          # w2 slab
               + 3 * D * 4            # b2, gamma, beta
               + tm * D * ix)         # out tile
    est += tm * D * 4                 # f32 accumulator scratch
    vmem_limit = int(min(64 * 1024 * 1024, max(32 * 1024 * 1024, 2 * est)))

    out2d = pl.pallas_call(
        functools.partial(ffn_kernel, matmul_dtype=matmul_dtype),
        out_shape=jax.ShapeDtypeStruct((Tp, D), x.dtype),
        grid_spec=pltpu.PrefetchScalarGridSpec(
            num_scalar_prefetch=0,
            grid=grid,
            in_specs=[
                pl.BlockSpec((tm, D), lambda i, k: (i, 0)),   # x tile (reused over K)
                pl.BlockSpec((D, tH), lambda i, k: (0, k)),   # w1 K-slab
                pl.BlockSpec((1, tH), lambda i, k: (0, k)),   # b1 K-slab
                pl.BlockSpec((tH, D), lambda i, k: (k, 0)),   # w2 K-slab
                pl.BlockSpec((1, D), lambda i, k: (0, 0)),    # b2
                pl.BlockSpec((1, D), lambda i, k: (0, 0)),    # gamma
                pl.BlockSpec((1, D), lambda i, k: (0, 0)),    # beta
            ],
            out_specs=pl.BlockSpec((tm, D), lambda i, k: (i, 0)),
            scratch_shapes=[pltpu.VMEM((tm, D), jnp.float32)],
        ),
        compiler_params=pltpu.CompilerParams(
            dimension_semantics=("parallel", "arbitrary"),
            vmem_limit_bytes=vmem_limit,
        ),
    )(x2d, w1m, b1r, w2m, b2r, gr, br)

    if Tp != T:
        out2d = out2d[:T]
    return out2d.reshape(B, S, D)


def reference_ffn(x, w1, b1, w2, b2, gamma, beta):
    """Pure-JAX f32 reference matching the PyTorch module in eval mode."""
    h = jnp.maximum(x @ w1 + b1, 0.0)
    y = h @ w2 + b2
    y = y + x
    mean = jnp.mean(y, axis=-1, keepdims=True)
    var = jnp.mean((y - mean) ** 2, axis=-1, keepdims=True)
    return (y - mean) * jax.lax.rsqrt(var + LN_EPS) * gamma + beta


if __name__ == "__main__":
    # Small shapes consistent with the module: (batch, seq, dim_model), hidden
    B, S, D, H = 2, 8, 32, 64

    key = jax.random.PRNGKey(0)
    kx, k1, k2, k3, k4 = jax.random.split(key, 5)

    x = jax.random.normal(kx, (B, S, D), dtype=jnp.float32)

    # Deterministic parameter init (PyTorch Linear-style uniform bounds)
    bound1 = 1.0 / (D ** 0.5)
    bound2 = 1.0 / (H ** 0.5)
    w1 = jax.random.uniform(k1, (D, H), jnp.float32, -bound1, bound1)   # fc1.weight.T
    b1 = jax.random.uniform(k2, (H,), jnp.float32, -bound1, bound1)     # fc1.bias
    w2 = jax.random.uniform(k3, (H, D), jnp.float32, -bound2, bound2)   # fc2.weight.T
    b2 = jax.random.uniform(k4, (D,), jnp.float32, -bound2, bound2)     # fc2.bias
    gamma = jnp.ones((D,), jnp.float32)   # layer_norm.weight
    beta = jnp.zeros((D,), jnp.float32)   # layer_norm.bias

    ref = reference_ffn(x, w1, b1, w2, b2, gamma, beta)

    # Exactness check: pure-f32 matmul path.
    out_f32 = position_wise_feed_forward(x, w1, b1, w2, b2, gamma, beta,
                                         matmul_dtype=jnp.float32)
    out_f32 = jax.block_until_ready(out_f32)
    assert out_f32.shape == (B, S, D)
    assert jnp.allclose(out_f32, ref, atol=1e-5, rtol=1e-5), "f32 path mismatch"

    # Default fast path: bf16 MXU operands, f32 accumulation / LayerNorm.
    out = position_wise_feed_forward(x, w1, b1, w2, b2, gamma, beta)
    out = jax.block_until_ready(out)
    assert out.shape == (B, S, D)
    assert jnp.allclose(out, ref, atol=5e-2, rtol=5e-2), "bf16 path mismatch"

    print("KERNEL_OK")
</pallas_src>

<mosaic_0001>
module attributes {stable_mosaic.version = 11 : i64} {
  func.func @ffn_kernel(%arg0: i32, %arg1: i32, %arg2: memref<16x32xf32, #tpu.memory_space<vmem>>, %arg3: memref<32x64xf32, #tpu.memory_space<vmem>>, %arg4: memref<1x64xf32, #tpu.memory_space<vmem>>, %arg5: memref<64x32xf32, #tpu.memory_space<vmem>>, %arg6: memref<1x32xf32, #tpu.memory_space<vmem>>, %arg7: memref<1x32xf32, #tpu.memory_space<vmem>>, %arg8: memref<1x32xf32, #tpu.memory_space<vmem>>, %arg9: memref<16x32xf32, #tpu.memory_space<vmem>>, %arg10: memref<16x32xf32, #tpu.memory_space<vmem>>) attributes {dimension_semantics = [#tpu.dimension_semantics<parallel>, #tpu.dimension_semantics<arbitrary>], iteration_bounds = array<i64: 1, 1>, scalar_prefetch = 0 : i64, scratch_operands = 1 : i64, tpu.core_type = #tpu.core_type<tc>, window_params = [{transform_indices = @transform_0, window_bounds = array<i64: 16, 32>}, {transform_indices = @transform_1, window_bounds = array<i64: 32, 64>}, {transform_indices = @transform_2, window_bounds = array<i64: 1, 64>}, {transform_indices = @transform_3, window_bounds = array<i64: 64, 32>}, {pipeline_mode = #tpu.pipeline_mode<synchronous>, transform_indices = @transform_4, window_bounds = array<i64: 1, 32>}, {pipeline_mode = #tpu.pipeline_mode<synchronous>, transform_indices = @transform_5, window_bounds = array<i64: 1, 32>}, {pipeline_mode = #tpu.pipeline_mode<synchronous>, transform_indices = @transform_6, window_bounds = array<i64: 1, 32>}, {transform_indices = @transform_7, window_bounds = array<i64: 16, 32>}]} {
    %c0_i32 = arith.constant 0 : i32
    %0 = arith.cmpi eq, %arg1, %c0_i32 : i32
    %1 = arith.extui %0 : i1 to i32
    %c0_i32_0 = arith.constant 0 : i32
    %2 = arith.cmpi ne, %1, %c0_i32_0 : i32
    scf.if %2 {
      %cst_16 = arith.constant 0.000000e+00 : f32
      %19 = vector.broadcast %cst_16 : f32 to vector<16x32xf32>
      %c0_17 = arith.constant 0 : index
      %c0_18 = arith.constant 0 : index
      %20 = vector.load %arg10[%c0_17, %c0_18] : memref<16x32xf32, #tpu.memory_space<vmem>>, vector<16x32xf32>
      tpu.vector_store %arg10[%c0_17, %c0_18], %19 {strides = array<i32>} : memref<16x32xf32, #tpu.memory_space<vmem>>, vector<16x32xf32>,
    } else {
    }
    %c0 = arith.constant 0 : index
    %c0_1 = arith.constant 0 : index
    %3 = vector.load %arg2[%c0, %c0_1] : memref<16x32xf32, #tpu.memory_space<vmem>>, vector<16x32xf32>
    %c0_2 = arith.constant 0 : index
    %c0_3 = arith.constant 0 : index
    %4 = vector.load %arg3[%c0_2, %c0_3] : memref<32x64xf32, #tpu.memory_space<vmem>>, vector<32x64xf32>
    %cst = arith.constant dense<0.000000e+00> : vector<16x64xf32>
    %5 = tpu.matmul %3, %4, %cst {dimension_numbers = #tpu.dot_dimension_numbers<[1], [0], [0], [1], [0, 0, 1, 1], [], []>} : vector<16x32xf32>, vector<32x64xf32>, vector<16x64xf32> -> vector<16x64xf32>
    %c0_4 = arith.constant 0 : index
    %c0_5 = arith.constant 0 : index
    %6 = vector.load %arg4[%c0_4, %c0_5] : memref<1x64xf32, #tpu.memory_space<vmem>>, vector<1x64xf32>
    %7 = vector.broadcast %6 : vector<1x64xf32> to vector<16x64xf32>
    %8 = arith.addf %5, %7 : vector<16x64xf32>
    %cst_6 = arith.constant 0.000000e+00 : f32
    %9 = vector.broadcast %cst_6 : f32 to vector<16x64xf32>
    %10 = arith.maximumf %8, %9 : vector<16x64xf32>
    %c0_7 = arith.constant 0 : index
    %c0_8 = arith.constant 0 : index
    %11 = vector.load %arg10[%c0_7, %c0_8] : memref<16x32xf32, #tpu.memory_space<vmem>>, vector<16x32xf32>
    %c0_9 = arith.constant 0 : index
    %c0_10 = arith.constant 0 : index
    %12 = vector.load %arg5[%c0_9, %c0_10] : memref<64x32xf32, #tpu.memory_space<vmem>>, vector<64x32xf32>
    %cst_11 = arith.constant dense<0.000000e+00> : vector<16x32xf32>
    %13 = tpu.matmul %10, %12, %cst_11 {dimension_numbers = #tpu.dot_dimension_numbers<[1], [0], [0], [1], [0, 0, 1, 1], [], []>} : vector<16x64xf32>, vector<64x32xf32>, vector<16x32xf32> -> vector<16x32xf32>
    %14 = arith.addf %11, %13 : vector<16x32xf32>
    %c0_12 = arith.constant 0 : index
    %c0_13 = arith.constant 0 : index
    %15 = vector.load %arg10[%c0_12, %c0_13] : memref<16x32xf32, #tpu.memory_space<vmem>>, vector<16x32xf32>
    tpu.vector_store %arg10[%c0_12, %c0_13], %14 {strides = array<i32>} : memref<16x32xf32, #tpu.memory_space<vmem>>, vector<16x32xf32>,
    %c0_i32_14 = arith.constant 0 : i32
    %16 = arith.cmpi eq, %arg1, %c0_i32_14 : i32
    %17 = arith.extui %16 : i1 to i32
    %c0_i32_15 = arith.constant 0 : i32
    %18 = arith.cmpi ne, %17, %c0_i32_15 : i32
    scf.if %18 {
      %c0_16 = arith.constant 0 : index
      %c0_17 = arith.constant 0 : index
      %19 = vector.load %arg10[%c0_16, %c0_17] : memref<16x32xf32, #tpu.memory_space<vmem>>, vector<16x32xf32>
      %c0_18 = arith.constant 0 : index
      %c0_19 = arith.constant 0 : index
      %20 = vector.load %arg6[%c0_18, %c0_19] : memref<1x32xf32, #tpu.memory_space<vmem>>, vector<1x32xf32>
      %21 = vector.broadcast %20 : vector<1x32xf32> to vector<16x32xf32>
      %22 = arith.addf %19, %21 : vector<16x32xf32>
      %c0_20 = arith.constant 0 : index
      %c0_21 = arith.constant 0 : index
      %23 = vector.load %arg2[%c0_20, %c0_21] : memref<16x32xf32, #tpu.memory_space<vmem>>, vector<16x32xf32>
      %24 = arith.addf %22, %23 : vector<16x32xf32>
      %cst_22 = arith.constant dense<0.000000e+00> : vector<16xf32>
      %25 = vector.multi_reduction <add>, %24, %cst_22 [1] : vector<16x32xf32> to vector<16xf32>
      %26 = vector.shape_cast %25 : vector<16xf32> to vector<16x1xf32>
      %cst_23 = arith.constant 3.200000e+01 : f32
      %27 = vector.broadcast %cst_23 : f32 to vector<16x1xf32>
      %28 = arith.divf %26, %27 : vector<16x1xf32>
      %29 = vector.broadcast %28 : vector<16x1xf32> to vector<16x32xf32>
      %30 = arith.subf %24, %29 : vector<16x32xf32>
      %31 = arith.mulf %30, %30 : vector<16x32xf32>
      %cst_24 = arith.constant dense<0.000000e+00> : vector<16xf32>
      %32 = vector.multi_reduction <add>, %31, %cst_24 [1] : vector<16x32xf32> to vector<16xf32>
      %33 = vector.shape_cast %32 : vector<16xf32> to vector<16x1xf32>
      %cst_25 = arith.constant 3.200000e+01 : f32
      %34 = vector.broadcast %cst_25 : f32 to vector<16x1xf32>
      %35 = arith.divf %33, %34 : vector<16x1xf32>
      %cst_26 = arith.constant 9.99999974E-6 : f32
      %36 = vector.broadcast %cst_26 : f32 to vector<16x1xf32>
      %37 = arith.addf %35, %36 : vector<16x1xf32>
      %38 = math.rsqrt %37 : vector<16x1xf32>
      %39 = vector.broadcast %38 : vector<16x1xf32> to vector<16x32xf32>
      %40 = arith.mulf %30, %39 : vector<16x32xf32>
      %c0_27 = arith.constant 0 : index
      %c0_28 = arith.constant 0 : index
      %41 = vector.load %arg7[%c0_27, %c0_28] : memref<1x32xf32, #tpu.memory_space<vmem>>, vector<1x32xf32>
      %42 = vector.broadcast %41 : vector<1x32xf32> to vector<16x32xf32>
      %43 = arith.mulf %40, %42 : vector<16x32xf32>
      %c0_29 = arith.constant 0 : index
      %c0_30 = arith.constant 0 : index
      %44 = vector.load %arg8[%c0_29, %c0_30] : memref<1x32xf32, #tpu.memory_space<vmem>>, vector<1x32xf32>
      %45 = vector.broadcast %44 : vector<1x32xf32> to vector<16x32xf32>
      %46 = arith.addf %43, %45 : vector<16x32xf32>
      %c0_31 = arith.constant 0 : index
      %c0_32 = arith.constant 0 : index
      %47 = vector.load %arg9[%c0_31, %c0_32] : memref<16x32xf32, #tpu.memory_space<vmem>>, vector<16x32xf32>
      tpu.vector_store %arg9[%c0_31, %c0_32], %46 {strides = array<i32>} : memref<16x32xf32, #tpu.memory_space<vmem>>, vector<16x32xf32>,
    } else {
    }
    return
  }
  func.func @transform_0(%arg0: i32, %arg1: i32) -> (i32, i32) {
    %c0_i32 = arith.constant 0 : i32
    %c0_i32_0 = arith.constant 0 : i32
    return %arg0, %c0_i32 : i32, i32
  }
  func.func @transform_1(%arg0: i32, %arg1: i32) -> (i32, i32) {
    %c0_i32 = arith.constant 0 : i32
    %c0_i32_0 = arith.constant 0 : i32
    return %c0_i32, %arg1 : i32, i32
  }
  func.func @transform_2(%arg0: i32, %arg1: i32) -> (i32, i32) {
    %c0_i32 = arith.constant 0 : i32
    %c0_i32_0 = arith.constant 0 : i32
    return %c0_i32, %arg1 : i32, i32
  }
  func.func @transform_3(%arg0: i32, %arg1: i32) -> (i32, i32) {
    %c0_i32 = arith.constant 0 : i32
    %c0_i32_0 = arith.constant 0 : i32
    return %arg1, %c0_i32 : i32, i32
  }
  func.func @transform_4(%arg0: i32, %arg1: i32) -> (i32, i32) {
    %c0_i32 = arith.constant 0 : i32
    %c0_i32_0 = arith.constant 0 : i32
    %c0_i32_1 = arith.constant 0 : i32
    return %c0_i32, %c0_i32_0 : i32, i32
  }
  func.func @transform_5(%arg0: i32, %arg1: i32) -> (i32, i32) {
    %c0_i32 = arith.constant 0 : i32
    %c0_i32_0 = arith.constant 0 : i32
    %c0_i32_1 = arith.constant 0 : i32
    return %c0_i32, %c0_i32_0 : i32, i32
  }
  func.func @transform_6(%arg0: i32, %arg1: i32) -> (i32, i32) {
    %c0_i32 = arith.constant 0 : i32
    %c0_i32_0 = arith.constant 0 : i32
    %c0_i32_1 = arith.constant 0 : i32
    return %c0_i32, %c0_i32_0 : i32, i32
  }
  func.func @transform_7(%arg0: i32, %arg1: i32) -> (i32, i32) {
    %c0_i32 = arith.constant 0 : i32
    %c0_i32_0 = arith.constant 0 : i32
    return %arg0, %c0_i32 : i32, i32
  }
}

</mosaic_0001>

<llo_original>
// kernel: position_wise_feed_forward.1
$region0: #{position_wise_feed_forward.1}
  #allocation0 [shape = 'u32[]', space=smem, size = 0x4, offset = 0x4, fixed_abs, tag = 'smem constant byte address 0x4 - core index']
  #allocation1 [shape = 'u32[144,128]{1,0:T(1,128)}', space=vmem, size = 0x12000, scoped, tag = 'internal scratch']
  #allocation2 [shape = 'f32[16,32]{1,0:T(8,128)}', space=vmem, size = 0x2000, scoped, tag = 'scratch operand']
  %s0 = inlined_call_operand.vmem [shape: f32[16,32], index: 0, kind: input, shape index: {}]
  %s1 = inlined_call_operand.vmem [shape: f32[32,64], index: 1, kind: input, shape index: {}]
  %s2 = inlined_call_operand.vmem [shape: f32[1,64], index: 2, kind: input, shape index: {}]
  %s3 = inlined_call_operand.vmem [shape: f32[64,32], index: 3, kind: input, shape index: {}]
  %s4 = inlined_call_operand.vmem [shape: f32[1,32], index: 4, kind: input, shape index: {}]
  %s5 = inlined_call_operand.vmem [shape: f32[1,32], index: 5, kind: input, shape index: {}]
  %s6 = inlined_call_operand.vmem [shape: f32[1,32], index: 6, kind: input, shape index: {}]
  %s7 = inlined_call_operand.hbm [shape: f32[16,32], index: 7, kind: output, shape index: {}]
  %s8 = sld [smem:[#allocation0]]
  $region46: #{position_wise_feed_forward.1} parent=0
    _
  %s10 = ssub.s32 1, %s8
  %s11 = scalar_select 0, %s10, %s8
  $region1: #{position_wise_feed_forward.1} parent=0
    #allocation3 [shape = 'u8[8192]{0}', space=vmem, size = 0x2000, scoped, tag = 'output window, operand 0, single buffered']
    #allocation4 [shape = 's32[1]{0}', space=sflag, size = 0x4, scoped, tag = 'scoped memory for position_wise_feed_forward.1']
    %12 = vsyncpa [#allocation4], 0
    // Predicated region
    $region2: #{position_wise_feed_forward.1} parent=1 // pred_check
      _
    $region3: #{position_wise_feed_forward.1} parent=1 // pred_check_branch
      %14 = sbr.rel (0) target = $region5
    $region4: #{position_wise_feed_forward.1} parent=1 // pred_region
      _
    $region5: #{position_wise_feed_forward.1} parent=1 // pred_fallthru
      _
    // Predicated region
    $region6: #{position_wise_feed_forward.1} parent=1 // pred_check
      _
    $region7: #{position_wise_feed_forward.1} parent=1 // pred_check_branch
      %16 = sbr.rel (0) target = $region9
    $region8: #{position_wise_feed_forward.1} parent=1 // pred_region
      _
    $region9: #{position_wise_feed_forward.1} parent=1 // pred_fallthru
      _
    // Predicated region
    $region10: #{position_wise_feed_forward.1} parent=1 // pred_check
      _
    $region11: #{position_wise_feed_forward.1} parent=1 // pred_check_branch
      %18 = sbr.rel (0) target = $region13
    $region12: #{position_wise_feed_forward.1} parent=1 // pred_region
      _
    $region13: #{position_wise_feed_forward.1} parent=1 // pred_fallthru
      _
    // Predicated region
    $region14: #{position_wise_feed_forward.1} parent=1 // pred_check
      _
    $region15: #{position_wise_feed_forward.1} parent=1 // pred_check_branch
      %20 = sbr.rel (0) target = $region17
    $region16: #{position_wise_feed_forward.1} parent=1 // pred_region
      _
    $region17: #{position_wise_feed_forward.1} parent=1 // pred_fallthru
      _
    // Predicated region
    $region18: #{position_wise_feed_forward.1} parent=1 // pred_check
      _
    $region19: #{position_wise_feed_forward.1} parent=1 // pred_check_branch
      %22 = sbr.rel (0) target = $region21
    $region20: #{position_wise_feed_forward.1} parent=1 // pred_region
      _
    $region21: #{position_wise_feed_forward.1} parent=1 // pred_fallthru
      _
    // Predicated region
    $region22: #{position_wise_feed_forward.1} parent=1 // pred_check
      _
    $region23: #{position_wise_feed_forward.1} parent=1 // pred_check_branch
      %24 = sbr.rel (0) target = $region25
    $region24: #{position_wise_feed_forward.1} parent=1 // pred_region
      _
    $region25: #{position_wise_feed_forward.1} parent=1 // pred_fallthru
      _
    // Predicated region
    $region26: #{position_wise_feed_forward.1} parent=1 // pred_check
      _
    $region27: #{position_wise_feed_forward.1} parent=1 // pred_check_branch
      %26 = sbr.rel (0) target = $region29
    $region28: #{position_wise_feed_forward.1} parent=1 // pred_region
      _
    $region29: #{position_wise_feed_forward.1} parent=1 // pred_fallthru
      _
    %p27 = scmp.eq.s32.totalorder 0, 0
    // Predicated region
    $region30: #{position_wise_feed_forward.1} parent=1 // pred_check
      %p28 = pneg %p27
    $region31: #{position_wise_feed_forward.1} parent=1 // pred_check_branch
      %30 = sbr.rel (%p28) target = $region33
    $region32: #{position_wise_feed_forward.1} parent=1 // pred_region
      %vm31 = vcmask 261120
      %32 = vst.msk [vmem:[#allocation2] sm:$0xff] %vm31, 0.0
      %33 = vst.msk [vmem:[#allocation2 + $0x8] sm:$0xff] %vm31, 0.0
    $region33: #{position_wise_feed_forward.1} parent=1 // pred_fallthru
      _
    %v34 = vld [vmem:[%s0] sm:$0xff]
    %v35 = vld [vmem:[%s0 + $0x8] sm:$0xff]
    %v36 = vld [vmem:[%s1] sm:$0xff]
    %v37 = vld [vmem:[%s1 + $0x8] sm:$0xff]
    %v38 = vld [vmem:[%s1 + $0x10] sm:$0xff]
    %v39 = vld [vmem:[%s1 + $0x18] sm:$0xff]
    %v40 = vld [vmem:[%s2] sm:$0x1]
    %v42 = vlaneseq
    %v43 = vshrl.u32 %v42, 7
    %v44 = vsub.s32 0, %v43
    %v45 = vrot.slane %v40, %v44
    %vm47 = vcmask 261120
    %v49 = vsel %vm47, %v34, 0
    %v52 = vsel %vm47, %v35, 0
    %54 = vmatprep.subr.mxu0 0.0
    %55 = vmatpush1.msra.mxu0 %v36
    %56 = vmatprep.subr.mxu0 0.0
    %57 = vmatpush1.msra.mxu0 %v37
    %58 = vmatprep.subr.mxu0 0.0
    %59 = vmatpush1.msra.mxu0 %v38
    %60 = vmatprep.subr.mxu0 0.0
    %61 = vmatpush1.msra.mxu0 %v39
    %62 = vmatprep.subr.mxu0 0.0
    %63 = vmatpush1.msra.mxu0 0.0
    %64 = vmatprep.subr.mxu0 0.0
    %65 = vmatpush1.msra.mxu0 0.0
    %66 = vmatprep.subr.mxu0 0.0
    %67 = vmatpush1.msra.mxu0 0.0
    %68 = vmatprep.subr.mxu0 0.0
    %69 = vmatpush1.msra.mxu0 0.0
    %70 = vmatprep.subr.mxu0 0.0
    %71 = vmatpush1.msra.mxu0 0.0
    %72 = vmatprep.subr.mxu0 0.0
    %73 = vmatpush1.msra.mxu0 0.0
    %74 = vmatprep.subr.mxu0 0.0
    %75 = vmatpush1.msra.mxu0 0.0
    %76 = vmatprep.subr.mxu0 0.0
    %77 = vmatpush1.msra.mxu0 0.0
    %78 = vmatprep.subr.mxu0 0.0
    %79 = vmatpush1.msra.mxu0 0.0
    %80 = vmatprep.subr.mxu0 0.0
    %81 = vmatpush1.msra.mxu0 0.0
    %82 = vmatprep.subr.mxu0 0.0
    %83 = vmatpush1.msra.mxu0 0.0
    %84 = vmatprep.subr.mxu0 0.0
    %85 = vmatpush1.msra.mxu0 0.0
    %86 = vmatprep.subr.mxu0 0.0
    %87 = vmatpush1.msra.mxu0 0.0
    %88 = vmatprep.subr.mxu0 0.0
    %89 = vmatpush1.msra.mxu0 0.0
    %90 = vmatprep.subr.mxu0 0.0
    %91 = vmatpush1.msra.mxu0 0.0
    %92 = vmatprep.subr.mxu0 0.0
    %93 = vmatpush1.msra.mxu0 0.0
    %94 = vmatprep.subr.mxu0 0.0
    %95 = vmatpush1.msra.mxu0 0.0
    %96 = vmatprep.subr.mxu0 0.0
    %97 = vmatpush1.msra.mxu0 0.0
    %98 = vmatprep.subr.mxu0 0.0
    %99 = vmatpush1.msra.mxu0 0.0
    %100 = vmatprep.subr.mxu0 0.0
    %101 = vmatpush1.msra.mxu0 0.0
    %102 = vmatprep.subr.mxu0 0.0
    %103 = vmatpush1.msra.mxu0 0.0
    %104 = vmatprep.subr.mxu0 0.0
    %105 = vmatpush1.msra.mxu0 0.0
    %106 = vmatprep.subr.mxu0 0.0
    %107 = vmatpush1.msra.mxu0 0.0
    %108 = vmatprep.subr.mxu0 0.0
    %109 = vmatpush1.msra.mxu0 0.0
    %110 = vmatprep.subr.mxu0 0.0
    %111 = vmatpush1.msra.mxu0 0.0
    %112 = vmatprep.subr.mxu0 0.0
    %113 = vmatpush1.msra.mxu0 0.0
    %114 = vmatprep.subr.mxu0 0.0
    %115 = vmatpush1.msra.mxu0 0.0
    %116 = vmatprep.subr.mxu0 0.0
    %117 = vmatpush1.msra.mxu0 0.0
    %118 = vmatprep.mubr.f32.mxu0 0.0
    %119 = vmatmul.mubr.f32.gmra.mrb[0].mxu0 %v49
    %v120 = vpop.f32.mrb[0].mxu0
    %v121 = vadd.f32 %v45, %v120
    %v122 = vpop.f32.mrb[0].mxu0
    %123 = vmatprep.mubr.f32.mxu0 0.0
    %124 = vmatmul.mubr.f32.gmra.mrb[0].mxu0 %v52
    %v125 = vpop.f32.mrb[0].mxu0
    %v126 = vadd.f32 %v45, %v125
    %v127 = vpop.f32.mrb[0].mxu0
    %128 = vdwg.mxu0
    %v129 = vmax.f32 %v121, 0.0
    %v130 = vmax.f32 %v126, 0.0
    %v131 = vld [vmem:[#allocation2] sm:$0xff]
    %v132 = vld [vmem:[#allocation2 + $0x8] sm:$0xff]
    %v133 = vld [vmem:[%s3] sm:$0xff]
    %v134 = vld [vmem:[%s3 + $0x8] sm:$0xff]
    %v135 = vld [vmem:[%s3 + $0x10] sm:$0xff]
    %v136 = vld [vmem:[%s3 + $0x18] sm:$0xff]
    %v137 = vld [vmem:[%s3 + $0x20] sm:$0xff]
    %v138 = vld [vmem:[%s3 + $0x28] sm:$0xff]
    %v139 = vld [vmem:[%s3 + $0x30] sm:$0xff]
    %v140 = vld [vmem:[%s3 + $0x38] sm:$0xff]
    %vm141 = vcmask 523264
    %v143 = vsel %vm141, %v129, 0
    %v146 = vsel %vm141, %v130, 0
    %148 = vmatprep.subr.mxu0 0.0
    %149 = vmatpush1.msra.mxu0 %v133
    %150 = vmatprep.subr.mxu0 0.0
    %151 = vmatpush1.msra.mxu0 %v134
    %152 = vmatprep.subr.mxu0 0.0
    %153 = vmatpush1.msra.mxu0 %v135
    %154 = vmatprep.subr.mxu0 0.0
    %155 = vmatpush1.msra.mxu0 %v136
    %156 = vmatprep.subr.mxu0 0.0
    %157 = vmatpush1.msra.mxu0 %v137
    %158 = vmatprep.subr.mxu0 0.0
    %159 = vmatpush1.msra.mxu0 %v138
    %160 = vmatprep.subr.mxu0 0.0
    %161 = vmatpush1.msra.mxu0 %v139
    %162 = vmatprep.subr.mxu0 0.0
    %163 = vmatpush1.msra.mxu0 %v140
    %164 = vmatprep.subr.mxu0 0.0
    %165 = vmatpush1.msra.mxu0 0.0
    %166 = vmatprep.subr.mxu0 0.0
    %167 = vmatpush1.msra.mxu0 0.0
    %168 = vmatprep.subr.mxu0 0.0
    %169 = vmatpush1.msra.mxu0 0.0
    %170 = vmatprep.subr.mxu0 0.0
    %171 = vmatpush1.msra.mxu0 0.0
    %172 = vmatprep.subr.mxu0 0.0
    %173 = vmatpush1.msra.mxu0 0.0
    %174 = vmatprep.subr.mxu0 0.0
    %175 = vmatpush1.msra.mxu0 0.0
    %176 = vmatprep.subr.mxu0 0.0
    %177 = vmatpush1.msra.mxu0 0.0
    %178 = vmatprep.subr.mxu0 0.0
    %179 = vmatpush1.msra.mxu0 0.0
    %180 = vmatprep.subr.mxu0 0.0
    %181 = vmatpush1.msra.mxu0 0.0
    %182 = vmatprep.subr.mxu0 0.0
    %183 = vmatpush1.msra.mxu0 0.0
    %184 = vmatprep.subr.mxu0 0.0
    %185 = vmatpush1.msra.mxu0 0.0
    %186 = vmatprep.subr.mxu0 0.0
    %187 = vmatpush1.msra.mxu0 0.0
    %188 = vmatprep.subr.mxu0 0.0
    %189 = vmatpush1.msra.mxu0 0.0
    %190 = vmatprep.subr.mxu0 0.0
    %191 = vmatpush1.msra.mxu0 0.0
    %192 = vmatprep.subr.mxu0 0.0
    %193 = vmatpush1.msra.mxu0 0.0
    %194 = vmatprep.subr.mxu0 0.0
    %195 = vmatpush1.msra.mxu0 0.0
    %196 = vmatprep.subr.mxu0 0.0
    %197 = vmatpush1.msra.mxu0 0.0
    %198 = vmatprep.subr.mxu0 0.0
    %199 = vmatpush1.msra.mxu0 0.0
    %200 = vmatprep.subr.mxu0 0.0
    %201 = vmatpush1.msra.mxu0 0.0
    %202 = vmatprep.subr.mxu0 0.0
    %203 = vmatpush1.msra.mxu0 0.0
    %204 = vmatprep.subr.mxu0 0.0
    %205 = vmatpush1.msra.mxu0 0.0
    %206 = vmatprep.subr.mxu0 0.0
    %207 = vmatpush1.msra.mxu0 0.0
    %208 = vmatprep.subr.mxu0 0.0
    %209 = vmatpush1.msra.mxu0 0.0
    %210 = vmatprep.subr.mxu0 0.0
    %211 = vmatpush1.msra.mxu0 0.0
    %212 = vmatprep.mubr.f32.mxu0 0.0
    %213 = vmatmul.mubr.f32.gmra.mrb[0].mxu0 %v143
    %v214 = vpop.f32.mrb[0].mxu0
    %v215 = vadd.f32 0.0, %v214
    %v216 = vpop.f32.mrb[0].mxu0
    %217 = vmatprep.mubr.f32.mxu0 0.0
    %218 = vmatmul.mubr.f32.gmra.mrb[0].mxu0 %v146
    %v219 = vpop.f32.mrb[0].mxu0
    %v220 = vadd.f32 0.0, %v219
    %v221 = vpop.f32.mrb[0].mxu0
    %222 = vdwg.mxu0
    %v223 = vadd.f32 %v131, %v215
    %v224 = vadd.f32 %v132, %v220
    %225 = vst.msk [vmem:[#allocation2] sm:$0xff] %vm47, %v223
    %226 = vst.msk [vmem:[#allocation2 + $0x8] sm:$0xff] %vm47, %v224
    // Predicated region
    $region34: #{position_wise_feed_forward.1} parent=1 // pred_check
      %p227 = pneg %p27
    $region35: #{position_wise_feed_forward.1} parent=1 // pred_check_branch
      %229 = sbr.rel (%p227) target = $region37
    $region36: #{position_wise_feed_forward.1} parent=1 // pred_region
      %v230 = vld [vmem:[#allocation2] sm:$0xff]
      %v231 = vld [vmem:[#allocation2 + $0x8] sm:$0xff]
      %v232 = vld [vmem:[%s4] sm:$0x1]
      %v234 = vlaneseq
      %v235 = vshrl.u32 %v234, 7
      %v236 = vsub.s32 0, %v235
      %v237 = vrot.slane %v232, %v236
      %v239 = vadd.f32 %v230, %v237
      %v240 = vadd.f32 %v231, %v237
      %v241 = vld [vmem:[%s0] sm:$0xff]
      %v242 = vld [vmem:[%s0 + $0x8] sm:$0xff]
      %v243 = vadd.f32 %v239, %v241
      %v244 = vadd.f32 %v240, %v242
      %v245 = vsel %vm47, %v243, 0.0
      %246 = vadd.xlane.f32.xlu0 %v245
      %v247 = vpop.xlane.xlu0 %246
      %v248 = vsel %vm47, %v244, 0.0
      %249 = vadd.xlane.f32.xlu0 %v248
      %v250 = vpop.xlane.xlu0 %249
      %v251 = vrcp.pop 32.0
      %v252 = vmul.f32 %v247, %v251
      %v253 = vmul.f32 %v250, %v251
      %v254 = vsub.f32 %v243, %v252
      %v255 = vsub.f32 %v244, %v253
      %v256 = vmul.f32 %v254, %v254
      %v257 = vmul.f32 %v255, %v255
      %v258 = vsel %vm47, %v256, 0.0
      %259 = vadd.xlane.f32.xlu0 %v258
      %v260 = vpop.xlane.xlu0 %259
      %v261 = vsel %vm47, %v257, 0.0
      %262 = vadd.xlane.f32.xlu0 %v261
      %v263 = vpop.xlane.xlu0 %262
      %v264 = vmul.f32 %v260, %v251
      %v265 = vmul.f32 %v263, %v251
      %v266 = vadd.f32 %v264, 1e-05
      %v267 = vadd.f32 %v265, 1e-05
      %v268 = vrsqrt.pop %v266
      %v269 = vrsqrt.pop %v267
      %v270 = vmul.f32 %v254, %v268
      %v271 = vmul.f32 %v255, %v269
      %v272 = vld [vmem:[%s5] sm:$0x1]
      %v274 = vlaneseq
      %v275 = vshrl.u32 %v274, 7
      %v276 = vsub.s32 0, %v275
      %v277 = vrot.slane %v272, %v276
      %v279 = vmul.f32 %v270, %v277
      %v280 = vmul.f32 %v271, %v277
      %v281 = vld [vmem:[%s6] sm:$0x1]
      %v283 = vlaneseq
      %v284 = vshrl.u32 %v283, 7
      %v285 = vsub.s32 0, %v284
      %v286 = vrot.slane %v281, %v285
      %v288 = vadd.f32 %v279, %v286
      %v289 = vadd.f32 %v280, %v286
      %290 = vst.msk [vmem:[#allocation3] sm:$0xff] %vm47, %v288
      %291 = vst.msk [vmem:[#allocation3 + $0x8] sm:$0xff] %vm47, %v289
    $region37: #{position_wise_feed_forward.1} parent=1 // pred_fallthru
      _
    // Predicated region
    $region38: #{position_wise_feed_forward.1} parent=1 // pred_check
      _
    $region39: #{position_wise_feed_forward.1} parent=1 // pred_check_branch
      %293 = sbr.rel (0) target = $region41
    $region40: #{position_wise_feed_forward.1} parent=1 // pred_region
      %s295 = ssub.s32 256, 256
      %296 = vsyncadd [#allocation4], %s295
      %s297 = sshll.u32 [#allocation3], 4
      %s298 = int_to_ptr.vmem [resolvable:$true] %s297
      %303 = dma.vmem_to_hbm [thread:$0]  %s298, 256, %s7, [#allocation4], 128, 128, 8
    $region41: #{position_wise_feed_forward.1} parent=1 // pred_fallthru
      _
    // Predicated region
    $region42: #{position_wise_feed_forward.1} parent=1 // pred_check
      _
    $region43: #{position_wise_feed_forward.1} parent=1 // pred_check_branch
      %305 = sbr.rel (0) target = $region45
    $region44: #{position_wise_feed_forward.1} parent=1 // pred_region
      %306 = dma.done [#allocation4], 256
    $region45: #{position_wise_feed_forward.1} parent=1 // pred_fallthru
      _
    %307 = vsyncpa [#allocation4], 1

</llo_original>
